<compile_context>
chip_gen: v7x
topology: tpu7x:2x2x1
jax: 0.10.0
libtpu: 0.0.40
codegen_flags: <defaults>
</compile_context>

<pallas_src>
import functools
import math

import jax
import jax.numpy as jnp
from jax.experimental import pallas as pl
from jax.experimental.pallas import tpu as pltpu

_INV_SQRT2 = 1.0 / math.sqrt(2.0)


def _round_up(x: int, m: int) -> int:
    return (x + m - 1) // m * m


def _vmem_capacity_bytes() -> int:
    """Best-effort per-core VMEM capacity (used only for tile selection)."""
    try:
        cap = getattr(pltpu.get_tpu_info(), "vmem_capacity_bytes", None)
        if cap:
            return int(cap)
    except Exception:
        pass
    try:
        if "v7" in jax.devices()[0].device_kind.lower():
            return 64 * 1024 * 1024
    except Exception:
        pass
    return 128 * 1024 * 1024


def _pick_th(H: int, target: int) -> int:
    """Largest 128-multiple divisor of H that is <= target (or H itself)."""
    if H <= target:
        return H
    for cand in range(target, 127, -128):
        if H % cand == 0:
            return cand
    return H


def _pick_tm(M, D, th, x_bytes, out_bytes, w_bufs, use_scratch, budget) -> int:
    """Largest row tile whose VMEM footprint (double-buffered) fits the budget."""
    cap_rows = _round_up(max(M, 1), 16)
    for cand in (1024, 768, 512, 384, 256, 128, 64, 32, 16):
        tm = min(cand, cap_rows)
        est = (2 * tm * D * x_bytes            # x tiles (double-buffered)
               + 2 * tm * D * out_bytes        # out tiles (double-buffered)
               + w_bufs * D * th * 2           # W1 buffers (bf16)
               + w_bufs * th * D * 2           # W2 buffers (bf16)
               + 2 * th * 4                    # bias slice (f32)
               + (tm * D * 4 if use_scratch else 0))
        if est <= budget:
            return tm
    return 16


def _mlp_kernel(x_ref, w1_ref, b1_ref, w2_ref, o_ref, *scratch, num_k):
    # grid = (M tiles [parallel], H tiles [arbitrary, innermost reduction]).
    # x_ref:  (TM, D) native dtype     w1_ref: (D, TH) bf16   b1_ref: (1, TH) f32
    # w2_ref: (TH, D) bf16             o_ref:  (TM, D)
    # scratch: () if the output itself is the f32 accumulator, else (acc_ref f32,).
    acc_ref = scratch[0] if scratch else None
    k = pl.program_id(1)

    # First linear on this hidden slice (bf16 MXU operands, f32 accumulation) + bias.
    x = x_ref[...].astype(jnp.bfloat16)
    h = jnp.dot(x, w1_ref[...], preferred_element_type=jnp.float32)
    h = h + b1_ref[...]

    # Exact (erf-based) GELU in f32 — matches torch.nn.GELU() default.
    g = 0.5 * h * (1.0 + jax.lax.erf(h * jnp.float32(_INV_SQRT2)))

    # Second linear (no bias): partial (TM, D) product for this hidden slice.
    partial = jnp.dot(g.astype(jnp.bfloat16), w2_ref[...],
                      preferred_element_type=jnp.float32)

    if acc_ref is None:
        # f32 output: accumulate directly into the resident output block.
        if num_k == 1:
            o_ref[...] = partial
        else:
            @pl.when(k == 0)
            def _():
                o_ref[...] = partial

            @pl.when(k > 0)
            def _():
                o_ref[...] += partial
    else:
        # Non-f32 output: f32 scratch accumulator; final partial fused into writeback.
        if num_k == 1:
            o_ref[...] = partial.astype(o_ref.dtype)
        else:
            @pl.when(k == 0)
            def _():
                acc_ref[...] = partial

            @pl.when(jnp.logical_and(k > 0, k < num_k - 1))
            def _():
                acc_ref[...] += partial

            @pl.when(k == num_k - 1)
            def _():
                o_ref[...] = (acc_ref[...] + partial).astype(o_ref.dtype)


def mlp_forward(x, w1_t, b1, w2_t):
    """x: [batch, seq, d_model]; w1_t: [d_model, d_hidden] (pre-transposed nn.Linear
    weight); b1: [d_hidden]; w2_t: [d_hidden, d_model].  Returns [batch, seq, d_model]
    in x.dtype.  For repeated calls pre-cast w1_t/w2_t to bf16 once (no-op here then)."""
    B, S, D = x.shape
    H = w1_t.shape[1]
    out_dtype = x.dtype
    M = B * S

    # Lane alignment.  (Prefer D and d_hidden tiles as multiples of 256 on v6e/v7x to
    # fully feed the 2x256 MXU; 128 is the hard requirement.)
    assert D % 128 == 0, "d_model must be a multiple of 128 (lane width)"

    x2d = x.reshape(M, D)                      # cast to bf16 happens inside the kernel
    w1c = w1_t if w1_t.dtype == jnp.bfloat16 else w1_t.astype(jnp.bfloat16)
    w2c = w2_t if w2_t.dtype == jnp.bfloat16 else w2_t.astype(jnp.bfloat16)
    b1_2d = b1.reshape(1, H).astype(jnp.float32)

    # --- device-adaptive tile / VMEM-limit selection -------------------------------
    vmem_cap = _vmem_capacity_bytes()
    small_vmem = vmem_cap < 100 * 1024 * 1024          # v7x-class (64 MiB per TC)
    if small_vmem:
        vmem_limit = 52 * 1024 * 1024                  # headroom under 64 MiB physical
        th_target = 256
    else:
        vmem_limit = 100 * 1024 * 1024                 # v5e/v6e have 128 MiB physical
        th_target = 512

    th = _pick_th(H, th_target)
    num_k = H // th

    acc_in_out = jnp.dtype(out_dtype) == jnp.float32   # accumulate straight into output
    use_scratch = not acc_in_out
    # Deeper weight prefetch only where VMEM is plentiful and the reduction is long.
    w_bufs = 3 if (not small_vmem and num_k >= 3) else 2

    x_bytes = jnp.dtype(x2d.dtype).itemsize
    out_bytes = jnp.dtype(out_dtype).itemsize
    budget = int(vmem_limit * 0.9)
    tm = _pick_tm(M, D, th, x_bytes, out_bytes, w_bufs, use_scratch, budget)

    # v7x: make sure the "parallel" M axis has >= 2 tiles so both TensorCores get work.
    # Skipped on v5e/v6e (single TC) where splitting only re-streams weights.
    if small_vmem and M >= 512 and _round_up(M, tm) // tm < 2:
        tm = _round_up((M + 1) // 2, 128)

    m_pad = _round_up(M, tm)
    if m_pad != M:
        x2d = jnp.pad(x2d, ((0, m_pad - M), (0, 0)))

    grid_m = m_pad // tm
    grid = (grid_m, num_k)

    # --- specs ----------------------------------------------------------------------
    if w_bufs == 3:
        w1_spec = pl.BlockSpec((D, th), lambda i, k: (0, k), pipeline_mode=pl.Buffered(3))
        w2_spec = pl.BlockSpec((th, D), lambda i, k: (k, 0), pipeline_mode=pl.Buffered(3))
    else:
        w1_spec = pl.BlockSpec((D, th), lambda i, k: (0, k))
        w2_spec = pl.BlockSpec((th, D), lambda i, k: (k, 0))

    in_specs = [
        pl.BlockSpec((tm, D), lambda i, k: (i, 0)),    # x row tile
        w1_spec,                                       # W1 hidden slice
        pl.BlockSpec((1, th), lambda i, k: (0, k)),    # bias hidden slice
        w2_spec,                                       # W2 hidden slice
    ]
    out_spec = pl.BlockSpec((tm, D), lambda i, k: (i, 0))
    scratch_shapes = [] if acc_in_out else [pltpu.VMEM((tm, D), jnp.float32)]

    # Honest byte count: W1/W2 (and bias) are re-streamed once per M tile.
    cost = pl.CostEstimate(
        flops=2 * 2 * m_pad * D * H,                   # two matmuls
        transcendentals=m_pad * H,                     # erf per hidden activation
        bytes_accessed=(m_pad * D * x_bytes
                        + m_pad * D * out_bytes
                        + grid_m * (w1c.size + w2c.size) * 2
                        + grid_m * H * 4),
    )

    out2d = pl.pallas_call(
        functools.partial(_mlp_kernel, num_k=num_k),
        out_shape=jax.ShapeDtypeStruct((m_pad, D), out_dtype),
        grid_spec=pltpu.PrefetchScalarGridSpec(
            num_scalar_prefetch=0,
            grid=grid,
            in_specs=in_specs,
            out_specs=out_spec,
            scratch_shapes=scratch_shapes,
        ),
        compiler_params=pltpu.CompilerParams(
            dimension_semantics=("parallel", "arbitrary"),
            vmem_limit_bytes=vmem_limit,
        ),
        cost_estimate=cost,
    )(x2d, w1c, b1_2d, w2c)

    return out2d[:M].reshape(B, S, D)


def gelu_ref(x):
    return 0.5 * x * (1.0 + jax.lax.erf(x / jnp.sqrt(2.0).astype(x.dtype)))


if __name__ == "__main__":
    # Small shapes consistent with the module's Config defaults:
    # d_model = 4*64 = 256, d_hidden = 4*4*64 = 1024.
    batch, seq, d_model = 2, 8, 256
    d_hidden = 4 * d_model

    key = jax.random.PRNGKey(0)
    kx, kw1, kb1, kw2 = jax.random.split(key, 4)

    x = jax.random.normal(kx, (batch, seq, d_model), dtype=jnp.float32)

    # Deterministic init mimicking nn.Linear (uniform +-1/sqrt(fan_in)).
    # PyTorch weight shape is (out, in); stored pre-transposed as (in, out).
    bound1 = 1.0 / math.sqrt(d_model)
    w1_t = jax.random.uniform(kw1, (d_model, d_hidden), jnp.float32,
                              minval=-bound1, maxval=bound1)
    b1 = jax.random.uniform(kb1, (d_hidden,), jnp.float32,
                            minval=-bound1, maxval=bound1)
    bound2 = 1.0 / math.sqrt(d_hidden)
    w2_t = jax.random.uniform(kw2, (d_hidden, d_model), jnp.float32,
                              minval=-bound2, maxval=bound2)

    # Hoisted one-time weight cast (inference-style); the wrapper then avoids
    # emitting any per-call weight-cast passes.
    w1_bf16 = w1_t.astype(jnp.bfloat16)
    w2_bf16 = w2_t.astype(jnp.bfloat16)

    out = mlp_forward(x, w1_bf16, b1, w2_bf16)
    out = jax.block_until_ready(out)

    # Pure-JAX f32 reference (kernel computes matmuls with bf16 operands and f32
    # accumulation, so use bf16-appropriate tolerances).
    ref = gelu_ref(x.reshape(-1, d_model) @ w1_t + b1) @ w2_t
    ref = ref.reshape(batch, seq, d_model)
    assert out.shape == (batch, seq, d_model)
    assert jnp.allclose(out, ref, atol=5e-2, rtol=5e-2), "mismatch vs reference"

    print("KERNEL_OK")
</pallas_src>

<mosaic_0001>
module attributes {stable_mosaic.version = 11 : i64} {
  func.func @_mlp_kernel(%arg0: i32, %arg1: i32, %arg2: memref<16x256xf32, #tpu.memory_space<vmem>>, %arg3: memref<256x512xbf16, #tpu.memory_space<vmem>>, %arg4: memref<1x512xf32, #tpu.memory_space<vmem>>, %arg5: memref<512x256xbf16, #tpu.memory_space<vmem>>, %arg6: memref<16x256xf32, #tpu.memory_space<vmem>>) attributes {dimension_semantics = [#tpu.dimension_semantics<parallel>, #tpu.dimension_semantics<arbitrary>], iteration_bounds = array<i64: 1, 2>, scalar_prefetch = 0 : i64, scratch_operands = 0 : i64, tpu.core_type = #tpu.core_type<tc>, window_params = [{transform_indices = @transform_0, window_bounds = array<i64: 16, 256>}, {transform_indices = @transform_1, window_bounds = array<i64: 256, 512>}, {transform_indices = @transform_2, window_bounds = array<i64: 1, 512>}, {transform_indices = @transform_3, window_bounds = array<i64: 512, 256>}, {transform_indices = @transform_4, window_bounds = array<i64: 16, 256>}]} {
    %c0 = arith.constant 0 : index
    %c0_0 = arith.constant 0 : index
    %0 = vector.load %arg2[%c0, %c0_0] : memref<16x256xf32, #tpu.memory_space<vmem>>, vector<16x256xf32>
    %1 = arith.truncf %0 : vector<16x256xf32> to vector<16x256xbf16>
    %c0_1 = arith.constant 0 : index
    %c0_2 = arith.constant 0 : index
    %2 = vector.load %arg3[%c0_1, %c0_2] : memref<256x512xbf16, #tpu.memory_space<vmem>>, vector<256x512xbf16>
    %cst = arith.constant dense<0.000000e+00> : vector<16x512xf32>
    %3 = tpu.matmul %1, %2, %cst {dimension_numbers = #tpu.dot_dimension_numbers<[1], [0], [0], [1], [0, 0, 1, 1], [], []>} : vector<16x256xbf16>, vector<256x512xbf16>, vector<16x512xf32> -> vector<16x512xf32>
    %c0_3 = arith.constant 0 : index
    %c0_4 = arith.constant 0 : index
    %4 = vector.load %arg4[%c0_3, %c0_4] : memref<1x512xf32, #tpu.memory_space<vmem>>, vector<1x512xf32>
    %5 = vector.broadcast %4 : vector<1x512xf32> to vector<16x512xf32>
    %6 = arith.addf %3, %5 : vector<16x512xf32>
    %cst_5 = arith.constant 5.000000e-01 : f32
    %7 = vector.broadcast %cst_5 : f32 to vector<16x512xf32>
    %8 = arith.mulf %7, %6 : vector<16x512xf32>
    %cst_6 = arith.constant 0.707106769 : f32
    %9 = vector.broadcast %cst_6 : f32 to vector<16x512xf32>
    %10 = arith.mulf %6, %9 : vector<16x512xf32>
    %11 = math.erf %10 : vector<16x512xf32>
    %cst_7 = arith.constant 1.000000e+00 : f32
    %12 = vector.broadcast %cst_7 : f32 to vector<16x512xf32>
    %13 = arith.addf %12, %11 : vector<16x512xf32>
    %14 = arith.mulf %8, %13 : vector<16x512xf32>
    %15 = arith.truncf %14 : vector<16x512xf32> to vector<16x512xbf16>
    %c0_8 = arith.constant 0 : index
    %c0_9 = arith.constant 0 : index
    %16 = vector.load %arg5[%c0_8, %c0_9] : memref<512x256xbf16, #tpu.memory_space<vmem>>, vector<512x256xbf16>
    %cst_10 = arith.constant dense<0.000000e+00> : vector<16x256xf32>
    %17 = tpu.matmul %15, %16, %cst_10 {dimension_numbers = #tpu.dot_dimension_numbers<[1], [0], [0], [1], [0, 0, 1, 1], [], []>} : vector<16x512xbf16>, vector<512x256xbf16>, vector<16x256xf32> -> vector<16x256xf32>
    %c0_i32 = arith.constant 0 : i32
    %18 = arith.cmpi eq, %arg1, %c0_i32 : i32
    %19 = arith.extui %18 : i1 to i32
    %c0_i32_11 = arith.constant 0 : i32
    %20 = arith.cmpi ne, %19, %c0_i32_11 : i32
    scf.if %20 {
      %c0_14 = arith.constant 0 : index
      %c0_15 = arith.constant 0 : index
      %24 = vector.load %arg6[%c0_14, %c0_15] : memref<16x256xf32, #tpu.memory_space<vmem>>, vector<16x256xf32>
      tpu.vector_store %arg6[%c0_14, %c0_15], %17 {strides = array<i32>} : memref<16x256xf32, #tpu.memory_space<vmem>>, vector<16x256xf32>,
    } else {
    }
    %c0_i32_12 = arith.constant 0 : i32
    %21 = arith.cmpi sgt, %arg1, %c0_i32_12 : i32
    %22 = arith.extui %21 : i1 to i32
    %c0_i32_13 = arith.constant 0 : i32
    %23 = arith.cmpi ne, %22, %c0_i32_13 : i32
    scf.if %23 {
      %c0_14 = arith.constant 0 : index
      %c0_15 = arith.constant 0 : index
      %24 = vector.load %arg6[%c0_14, %c0_15] : memref<16x256xf32, #tpu.memory_space<vmem>>, vector<16x256xf32>
      %25 = arith.addf %24, %17 : vector<16x256xf32>
      %c0_16 = arith.constant 0 : index
      %c0_17 = arith.constant 0 : index
      %26 = vector.load %arg6[%c0_16, %c0_17] : memref<16x256xf32, #tpu.memory_space<vmem>>, vector<16x256xf32>
      tpu.vector_store %arg6[%c0_16, %c0_17], %25 {strides = array<i32>} : memref<16x256xf32, #tpu.memory_space<vmem>>, vector<16x256xf32>,
    } else {
    }
    return
  }
  func.func @transform_0(%arg0: i32, %arg1: i32) -> (i32, i32) {
    %c0_i32 = arith.constant 0 : i32
    %c0_i32_0 = arith.constant 0 : i32
    return %arg0, %c0_i32 : i32, i32
  }
  func.func @transform_1(%arg0: i32, %arg1: i32) -> (i32, i32) {
    %c0_i32 = arith.constant 0 : i32
    %c0_i32_0 = arith.constant 0 : i32
    return %c0_i32, %arg1 : i32, i32
  }
  func.func @transform_2(%arg0: i32, %arg1: i32) -> (i32, i32) {
    %c0_i32 = arith.constant 0 : i32
    %c0_i32_0 = arith.constant 0 : i32
    return %c0_i32, %arg1 : i32, i32
  }
  func.func @transform_3(%arg0: i32, %arg1: i32) -> (i32, i32) {
    %c0_i32 = arith.constant 0 : i32
    %c0_i32_0 = arith.constant 0 : i32
    return %arg1, %c0_i32 : i32, i32
  }
  func.func @transform_4(%arg0: i32, %arg1: i32) -> (i32, i32) {
    %c0_i32 = arith.constant 0 : i32
    %c0_i32_0 = arith.constant 0 : i32
    return %arg0, %c0_i32 : i32, i32
  }
}

</mosaic_0001>

<llo_original>
// kernel: tpu_custom_call.1
$region0: #{tpu_custom_call.1}
  #allocation0 [shape = 'u32[]', space=smem, size = 0x4, offset = 0x4, fixed_abs, tag = 'smem constant byte address 0x4 - core index']
  #allocation1 [shape = 'u32[144,128]{1,0:T(1,128)}', space=vmem, size = 0x12000, scoped, tag = 'internal scratch']
  %s0 = inlined_call_operand.hbm [shape: f32[16,256], index: 0, kind: input, shape index: {}]
  %s1 = inlined_call_operand.hbm [shape: bf16[256,1024], index: 1, kind: input, shape index: {}]
  %s2 = inlined_call_operand.hbm [shape: f32[1,1024], index: 2, kind: input, shape index: {}]
  %s3 = inlined_call_operand.hbm [shape: bf16[1024,256], index: 3, kind: input, shape index: {}]
  %s4 = inlined_call_operand.hbm [shape: f32[16,256], index: 4, kind: output, shape index: {}]
  %s5 = sld [smem:[#allocation0]]
  $region73: #{tpu_custom_call.1} parent=0
    _
  %s7 = ssub.s32 1, %s5
  %s8 = scalar_select 0, %s7, %s5
  $region1: #{tpu_custom_call.1} parent=0
    #allocation2 [shape = 'u8[16384]{0}', space=vmem, size = 0x4000, scoped, tag = 'input window, operand 0, single buffered']
    #allocation3 [shape = 's32[2]{0}', space=sflag, size = 0x8, scoped, tag = 'scoped memory for tpu_custom_call.1']
    #allocation4 [shape = 's32[2]{0}', space=sflag, size = 0x8, scoped, tag = 'scoped memory for tpu_custom_call.1']
    #allocation5 [shape = 'u8[524288]{0}', space=vmem, size = 0x80000, scoped, tag = 'input window, operand 1']
    #allocation6 [shape = 's32[2]{0}', space=sflag, size = 0x8, scoped, tag = 'scoped memory for tpu_custom_call.1']
    #allocation7 [shape = 'u8[4096]{0}', space=vmem, size = 0x1000, scoped, tag = 'input window, operand 2']
    #allocation8 [shape = 'u8[524288]{0}', space=vmem, size = 0x80000, scoped, tag = 'input window, operand 3']
    #allocation9 [shape = 's32[2]{0}', space=sflag, size = 0x8, scoped, tag = 'scoped memory for tpu_custom_call.1']
    #allocation10 [shape = 'u8[16384]{0}', space=vmem, size = 0x4000, scoped, tag = 'output window, operand 0, single buffered']
    %9 = vsyncpa [#allocation3], 0
    %10 = vsyncpa [#allocation6], 0
    %s11 = scalar_lea.sflag [#allocation6], 1
    %12 = vsyncpa %s11, 0
    %13 = vsyncpa [#allocation9], 0
    %s14 = scalar_lea.sflag [#allocation9], 1
    %15 = vsyncpa %s14, 0
    %16 = vsyncpa [#allocation4], 0
    loop: start=0, step=1, limit=4
    $region2: #{tpu_custom_call.1} parent=1 // loop_pre_header
      _
    $region3: #{tpu_custom_call.1} parent=1 // loop_header
      %s18 = sphi 0, %s22
      %p19 = scmp.ge.s32.totalorder %s18, 4
      %s25 = sphi 0, %s37
      %s26 = sphi 0, %s33
      %s27 = sphi 0, %s25
      %s28 = sphi 0, %s26
      %s29 = sphi 0, %s27
      %s30 = sphi 0, %s28
      %s40 = sphi 0, %s42
      %s43 = sphi 0, %s40
      %s44 = sphi 0, %s43
      %s60 = sphi 0, %s44
      %s66 = sphi 0, %s68
      %s69 = sphi 0, %s66
      %s70 = sphi 0, %s69
      %s86 = sphi 0, %s70
      %s92 = sphi 0, %s94
      %s95 = sphi 0, %s92
      %s96 = sphi 0, %s95
      %s112 = sphi 0, %s96
      %s118 = sphi 0, %s120
      %s121 = sphi 0, %s118
      %s122 = sphi 0, %s121
      %s138 = sphi 0, %s122
      %s144 = sphi 0, %s146
      %s147 = sphi 0, %s144
      %s148 = sphi 0, %s147
      %s164 = sphi 0, %s148
    $region4: #{tpu_custom_call.1} parent=1 // loop_header_branch
      %21 = sbr.rel (%p19) target = $region8
    $region5: #{tpu_custom_call.1} parent=1 // loop_body
      %s23 = ssub.s32 %s18, 1
      %s24 = ssub.s32 %s18, 2
      %s31 = sadd.s32 1, %s26
      %p32 = scmp.ge.s32.totalorder %s31, 2
      %s33 = scalar_select %p32, 0, %s31
      %s34 = sadd.s32 1, %s25
      %s35 = scalar_select %p32, %s34, %s25
      %p36 = scmp.ge.s32.totalorder %s35, 1
      %s37 = scalar_select %p36, 0, %s35
      %s38 = ssub.s32 %s25, %s37
      %p39 = scmp.eq.s32.totalorder %s38, 0
      %s41 = sadd.s32 %s40, 1
      %s42 = scalar_select %p39, %s40, %s41
      %p45 = pneg %p39
      %p46 = scmp.eq.s32.totalorder %s18, 1
      %p47 = por %p45, %p46
      %p48 = scmp.ne.s32.totalorder %s40, %s43
      %p49 = scmp.eq.s32.totalorder %s18, 0
      %p50 = por %p48, %p49
      %p51 = scmp.ne.s32.totalorder %s40, %s43
      %p52 = scmp.eq.s32.totalorder %s23, 1
      %p53 = por %p51, %p52
      %p54 = scmp.ne.s32.totalorder %s43, %s44
      %p55 = scmp.eq.s32.totalorder %s23, 0
      %p56 = por %p54, %p55
      %p57 = scmp.ne.s32.totalorder %s43, %s44
      %p58 = scmp.eq.s32.totalorder %s24, 1
      %p59 = por %p57, %p58
      %p61 = scmp.ne.s32.totalorder %s44, %s60
      %p62 = scmp.eq.s32.totalorder %s24, 0
      %p63 = por %p61, %p62
      %s64 = ssub.s32 %s26, %s33
      %p65 = scmp.eq.s32.totalorder %s64, 0
      %s67 = sadd.s32 %s66, 1
      %s68 = scalar_select %p65, %s66, %s67
      %p71 = pneg %p65
      %p72 = scmp.eq.s32.totalorder %s18, 1
      %p73 = por %p71, %p72
      %p74 = scmp.ne.s32.totalorder %s66, %s69
      %p75 = scmp.eq.s32.totalorder %s18, 0
      %p76 = por %p74, %p75
      %p77 = scmp.ne.s32.totalorder %s66, %s69
      %p78 = scmp.eq.s32.totalorder %s23, 1
      %p79 = por %p77, %p78
      %p80 = scmp.ne.s32.totalorder %s69, %s70
      %p81 = scmp.eq.s32.totalorder %s23, 0
      %p82 = por %p80, %p81
      %p83 = scmp.ne.s32.totalorder %s69, %s70
      %p84 = scmp.eq.s32.totalorder %s24, 1
      %p85 = por %p83, %p84
      %p87 = scmp.ne.s32.totalorder %s70, %s86
      %p88 = scmp.eq.s32.totalorder %s24, 0
      %p89 = por %p87, %p88
      %s90 = ssub.s32 %s26, %s33
      %p91 = scmp.eq.s32.totalorder %s90, 0
      %s93 = sadd.s32 %s92, 1
      %s94 = scalar_select %p91, %s92, %s93
      %p97 = pneg %p91
      %p98 = scmp.eq.s32.totalorder %s18, 1
      %p99 = por %p97, %p98
      %p100 = scmp.ne.s32.totalorder %s92, %s95
      %p101 = scmp.eq.s32.totalorder %s18, 0
      %p102 = por %p100, %p101
      %p103 = scmp.ne.s32.totalorder %s92, %s95
      %p104 = scmp.eq.s32.totalorder %s23, 1
      %p105 = por %p103, %p104
      %p106 = scmp.ne.s32.totalorder %s95, %s96
      %p107 = scmp.eq.s32.totalorder %s23, 0
      %p108 = por %p106, %p107
      %p109 = scmp.ne.s32.totalorder %s95, %s96
      %p110 = scmp.eq.s32.totalorder %s24, 1
      %p111 = por %p109, %p110
      %p113 = scmp.ne.s32.totalorder %s96, %s112
      %p114 = scmp.eq.s32.totalorder %s24, 0
      %p115 = por %p113, %p114
      %s116 = ssub.s32 %s26, %s33
      %p117 = scmp.eq.s32.totalorder %s116, 0
      %s119 = sadd.s32 %s118, 1
      %s120 = scalar_select %p117, %s118, %s119
      %p123 = pneg %p117
      %p124 = scmp.eq.s32.totalorder %s18, 1
      %p125 = por %p123, %p124
      %p126 = scmp.ne.s32.totalorder %s118, %s121
      %p127 = scmp.eq.s32.totalorder %s18, 0
      %p128 = por %p126, %p127
      %p129 = scmp.ne.s32.totalorder %s118, %s121
      %p130 = scmp.eq.s32.totalorder %s23, 1
      %p131 = por %p129, %p130
      %p132 = scmp.ne.s32.totalorder %s121, %s122
      %p133 = scmp.eq.s32.totalorder %s23, 0
      %p134 = por %p132, %p133
      %p135 = scmp.ne.s32.totalorder %s121, %s122
      %p136 = scmp.eq.s32.totalorder %s24, 1
      %p137 = por %p135, %p136
      %p139 = scmp.ne.s32.totalorder %s122, %s138
      %p140 = scmp.eq.s32.totalorder %s24, 0
      %p141 = por %p139, %p140
      %s142 = ssub.s32 %s25, %s37
      %p143 = scmp.eq.s32.totalorder %s142, 0
      %s145 = sadd.s32 %s144, 1
      %s146 = scalar_select %p143, %s144, %s145
      %p149 = pneg %p143
      %p150 = scmp.eq.s32.totalorder %s18, 1
      %p151 = por %p149, %p150
      %p152 = scmp.ne.s32.totalorder %s144, %s147
      %p153 = scmp.eq.s32.totalorder %s18, 0
      %p154 = por %p152, %p153
      %p155 = scmp.ne.s32.totalorder %s144, %s147
      %p156 = scmp.eq.s32.totalorder %s23, 1
      %p157 = por %p155, %p156
      %p158 = scmp.ne.s32.totalorder %s147, %s148
      %p159 = scmp.eq.s32.totalorder %s23, 0
      %p160 = por %p158, %p159
      %p161 = scmp.ne.s32.totalorder %s147, %s148
      %p162 = scmp.eq.s32.totalorder %s24, 1
      %p163 = por %p161, %p162
      %p165 = scmp.ne.s32.totalorder %s148, %s164
      %p166 = scmp.eq.s32.totalorder %s24, 0
      %p167 = por %p165, %p166
      %p168 = scmp.le.s32.totalorder 1, %s18
      %p169 = scmp.lt.s32.totalorder %s18, 3
      %p170 = pnand %p168, %p169
      %p171 = pneg %p170
      // Predicated region
      $region9: #{tpu_custom_call.1} parent=5 // pred_check
        _
      $region10: #{tpu_custom_call.1} parent=5 // pred_check_branch
        %173 = sbr.rel (%p170) target = $region12
      $region11: #{tpu_custom_call.1} parent=5 // pred_region
        %s174 = ssub.s32 %s18, 1
        // Predicated region
        $region13: #{tpu_custom_call.1} parent=11 // pred_check
          %p175 = pneg %p56
        $region14: #{tpu_custom_call.1} parent=11 // pred_check_branch
          %177 = sbr.rel (%p175) target = $region16
        $region15: #{tpu_custom_call.1} parent=11 // pred_region
          %s178 = smul.u32 2, %s27
          %s180 = ssub.s32 512, 512
          %181 = vsyncadd [#allocation3], %s180
          %s182 = smul.addr %s178, 2
          %s183 = smul.addr %s182, 128
          %s184 = scalar_lea.hbm %s0, %s183
          %s185 = sshll.u32 [#allocation2], 4
          %s186 = int_to_ptr.vmem [resolvable:$true] %s185
          %191 = dma.hbm_to_vmem [thread:$0]  %s184, 512, %s186, [#allocation3], 256, 256, 16
        $region16: #{tpu_custom_call.1} parent=11 // pred_fallthru
          _
      $region12: #{tpu_custom_call.1} parent=5 // pred_fallthru
        _
      %p192 = scmp.lt.s32.totalorder %s18, 2
      // Predicated region
      $region17: #{tpu_custom_call.1} parent=5 // pred_check
        %p193 = pneg %p192
      $region18: #{tpu_custom_call.1} parent=5 // pred_check_branch
        %195 = sbr.rel (%p193) target = $region20
      $region19: #{tpu_custom_call.1} parent=5 // pred_region
        // Predicated region
        $region21: #{tpu_custom_call.1} parent=19 // pred_check
          %p196 = pneg %p76
        $region22: #{tpu_custom_call.1} parent=19 // pred_check_branch
          %198 = sbr.rel (%p196) target = $region24
        $region23: #{tpu_custom_call.1} parent=19 // pred_region
          %s199 = sand.u32 %s18, 1
          %s200 = scalar_lea.sflag [#allocation6], %s199
          %s201 = sand.u32 %s66, 1
          %s202 = smul.addr %s201, 512
          %s203 = scalar_lea.vmem [#allocation5], %s202
          %s204 = smul.u32 4, %s26
          %s206 = ssub.s32 8192, 8192
          %207 = vsyncadd %s200, %s206
          %s208 = smul.addr %s204, 64
          %s209 = scalar_lea.hbm %s1, %s208
          %s210 = sshll.u32 %s203, 4
          %s211 = int_to_ptr.vmem [resolvable:$true] %s210
          %216 = dma.hbm_to_vmem [thread:$0]  %s209, 8192, %s211, %s200, 512, 256, 16
        $region24: #{tpu_custom_call.1} parent=19 // pred_fallthru
          _
        // Predicated region
        $region25: #{tpu_custom_call.1} parent=19 // pred_check
          %p217 = pneg %p102
        $region26: #{tpu_custom_call.1} parent=19 // pred_check_branch
          %219 = sbr.rel (%p217) target = $region28
        $region27: #{tpu_custom_call.1} parent=19 // pred_region
          %s220 = sand.u32 %s18, 1
          %s221 = scalar_lea.sflag [#allocation6], %s220
          %s222 = sand.u32 %s92, 1
          %s223 = smul.addr %s222, 4
          %s224 = scalar_lea.vmem [#allocation7], %s223
          %s225 = smul.u32 4, %s26
          %s227 = ssub.s32 64, 64
          %228 = vsyncadd %s221, %s227
          %s229 = smul.addr %s225, 16
          %s230 = scalar_lea.hbm %s2, %s229
          %s232 = sshll.u32 %s224, 4
          %s233 = int_to_ptr.vmem [resolvable:$true] %s232
          %235 = dma.hbm_to_vmem [thread:$0]  %s230, 64, %s233, %s221
        $region28: #{tpu_custom_call.1} parent=19 // pred_fallthru
          _
        // Predicated region
        $region29: #{tpu_custom_call.1} parent=19 // pred_check
          %p236 = pneg %p128
        $region30: #{tpu_custom_call.1} parent=19 // pred_check_branch
          %238 = sbr.rel (%p236) target = $region32
        $region31: #{tpu_custom_call.1} parent=19 // pred_region
          %s239 = sand.u32 %s118, 1
          %s240 = scalar_lea.sflag [#allocation9], %s239
          %s241 = sand.u32 %s118, 1
          %s242 = smul.addr %s241, 512
          %s243 = scalar_lea.vmem [#allocation8], %s242
          %s244 = smul.u32 64, %s26
          %s246 = ssub.s32 8192, 8192
          %247 = vsyncadd %s240, %s246
          %s248 = smul.addr %s244, 2
          %s249 = smul.addr %s248, 64
          %s250 = scalar_lea.hbm %s3, %s249
          %s251 = sshll.u32 %s243, 4
          %s252 = int_to_ptr.vmem [resolvable:$true] %s251
          %257 = dma.hbm_to_vmem [thread:$0]  %s250, 8192, %s252, %s240, 128, 128, 8
        $region32: #{tpu_custom_call.1} parent=19 // pred_fallthru
          _
      $region20: #{tpu_custom_call.1} parent=5 // pred_fallthru
        _
      %p258 = scmp.le.s32.totalorder 1, %s18
      %p259 = scmp.lt.s32.totalorder %s18, 3
      %p260 = pnand %p258, %p259
      %p261 = pneg %p260
      // Predicated region
      $region33: #{tpu_custom_call.1} parent=5 // pred_check
        _
      $region34: #{tpu_custom_call.1} parent=5 // pred_check_branch
        %263 = sbr.rel (%p260) target = $region36
      $region35: #{tpu_custom_call.1} parent=5 // pred_region
        %s264 = ssub.s32 %s18, 1
        // Predicated region
        $region37: #{tpu_custom_call.1} parent=35 // pred_check
          %p265 = pneg %p56
        $region38: #{tpu_custom_call.1} parent=35 // pred_check_branch
          %267 = sbr.rel (%p265) target = $region40
        $region39: #{tpu_custom_call.1} parent=35 // pred_region
          %268 = dma.done [#allocation3], 512
        $region40: #{tpu_custom_call.1} parent=35 // pred_fallthru
          _
        %s269 = sand.u32 %s23, 1
        %s270 = scalar_lea.sflag [#allocation6], %s269
        %s271 = sand.u32 %s69, 1
        %s272 = smul.addr %s271, 512
        %s273 = scalar_lea.vmem [#allocation5], %s272
        // Predicated region
        $region41: #{tpu_custom_call.1} parent=35 // pred_check
          %p274 = pneg %p82
        $region42: #{tpu_custom_call.1} parent=35 // pred_check_branch
          %276 = sbr.rel (%p274) target = $region44
        $region43: #{tpu_custom_call.1} parent=35 // pred_region
          %277 = dma.done %s270, 8192
        $region44: #{tpu_custom_call.1} parent=35 // pred_fallthru
          _
        %s278 = sand.u32 %s23, 1
        %s279 = scalar_lea.sflag [#allocation6], %s278
        %s280 = sand.u32 %s95, 1
        %s281 = smul.addr %s280, 4
        %s282 = scalar_lea.vmem [#allocation7], %s281
        // Predicated region
        $region45: #{tpu_custom_call.1} parent=35 // pred_check
          %p283 = pneg %p108
        $region46: #{tpu_custom_call.1} parent=35 // pred_check_branch
          %285 = sbr.rel (%p283) target = $region48
        $region47: #{tpu_custom_call.1} parent=35 // pred_region
          %286 = dma.done %s279, 64
        $region48: #{tpu_custom_call.1} parent=35 // pred_fallthru
          _
        %s287 = sand.u32 %s121, 1
        %s288 = scalar_lea.sflag [#allocation9], %s287
        %s289 = sand.u32 %s121, 1
        %s290 = smul.addr %s289, 512
        %s291 = scalar_lea.vmem [#allocation8], %s290
        // Predicated region
        $region49: #{tpu_custom_call.1} parent=35 // pred_check
          %p292 = pneg %p134
        $region50: #{tpu_custom_call.1} parent=35 // pred_check_branch
          %294 = sbr.rel (%p292) target = $region52
        $region51: #{tpu_custom_call.1} parent=35 // pred_region
          %295 = dma.done %s288, 8192
        $region52: #{tpu_custom_call.1} parent=35 // pred_fallthru
          _
        %p296 = pneg %p56
        %p297 = pneg %p53
        %s298 = sand.u32 %s23, 1
        %s299 = scalar_lea.sflag [#allocation6], %s298
        %s300 = sand.u32 %s69, 1
        %s301 = smul.addr %s300, 512
        %s302 = scalar_lea.vmem [#allocation5], %s301
        %p303 = pneg %p82
        %p304 = pneg %p79
        %s305 = sand.u32 %s23, 1
        %s306 = scalar_lea.sflag [#allocation6], %s305
        %s307 = sand.u32 %s95, 1
        %s308 = smul.addr %s307, 4
        %s309 = scalar_lea.vmem [#allocation7], %s308
        %p310 = pneg %p108
        %p311 = pneg %p105
        %s312 = sand.u32 %s121, 1
        %s313 = scalar_lea.sflag [#allocation9], %s312
        %s314 = sand.u32 %s121, 1
        %s315 = smul.addr %s314, 512
        %s316 = scalar_lea.vmem [#allocation8], %s315
        %p317 = pneg %p134
        %p318 = pneg %p131
        %p319 = pneg %p160
        %p320 = pneg %p157
        %s321 = smul.u32 2, %s27
        %s322 = smul.u32 4, %s28
        %s323 = smul.u32 4, %s28
        %s324 = smul.u32 64, %s28
        %s325 = smul.u32 2, %s27
        %v326 = vld [vmem:[#allocation2] sm:$0xff]
        %v327 = vld [vmem:[#allocation2 + $0x8] sm:$0xff]
        %v328 = vld [vmem:[#allocation2 + $0x10] sm:$0xff]
        %v329 = vld [vmem:[#allocation2 + $0x18] sm:$0xff]
        %v330 = vpack.c.bf16 %v328, %v326
        %v331 = vpack.c.bf16 %v329, %v327
        %v332 = vld [vmem:[%s273] sm:$0xff]
        %v333 = vld [vmem:[%s273 + $0x8] sm:$0xff]
        %v334 = vld [vmem:[%s273 + $0x10] sm:$0xff]
        %v335 = vld [vmem:[%s273 + $0x18] sm:$0xff]
        %v336 = vld [vmem:[%s273 + $0x20] sm:$0xff]
        %v337 = vld [vmem:[%s273 + $0x28] sm:$0xff]
        %v338 = vld [vmem:[%s273 + $0x30] sm:$0xff]
        %v339 = vld [vmem:[%s273 + $0x38] sm:$0xff]
        %v340 = vld [vmem:[%s273 + $0x40] sm:$0xff]
        %v341 = vld [vmem:[%s273 + $0x48] sm:$0xff]
        %v342 = vld [vmem:[%s273 + $0x50] sm:$0xff]
        %v343 = vld [vmem:[%s273 + $0x58] sm:$0xff]
        %v344 = vld [vmem:[%s273 + $0x60] sm:$0xff]
        %v345 = vld [vmem:[%s273 + $0x68] sm:$0xff]
        %v346 = vld [vmem:[%s273 + $0x70] sm:$0xff]
        %v347 = vld [vmem:[%s273 + $0x78] sm:$0xff]
        %v348 = vld [vmem:[%s273 + $0x80] sm:$0xff]
        %v349 = vld [vmem:[%s273 + $0x88] sm:$0xff]
        %v350 = vld [vmem:[%s273 + $0x90] sm:$0xff]
        %v351 = vld [vmem:[%s273 + $0x98] sm:$0xff]
        %v352 = vld [vmem:[%s273 + $0xa0] sm:$0xff]
        %v353 = vld [vmem:[%s273 + $0xa8] sm:$0xff]
        %v354 = vld [vmem:[%s273 + $0xb0] sm:$0xff]
        %v355 = vld [vmem:[%s273 + $0xb8] sm:$0xff]
        %v356 = vld [vmem:[%s273 + $0xc0] sm:$0xff]
        %v357 = vld [vmem:[%s273 + $0xc8] sm:$0xff]
        %v358 = vld [vmem:[%s273 + $0xd0] sm:$0xff]
        %v359 = vld [vmem:[%s273 + $0xd8] sm:$0xff]
        %v360 = vld [vmem:[%s273 + $0xe0] sm:$0xff]
        %v361 = vld [vmem:[%s273 + $0xe8] sm:$0xff]
        %v362 = vld [vmem:[%s273 + $0xf0] sm:$0xff]
        %v363 = vld [vmem:[%s273 + $0xf8] sm:$0xff]
        %v364 = vld [vmem:[%s273 + $0x100] sm:$0xff]
        %v365 = vld [vmem:[%s273 + $0x108] sm:$0xff]
        %v366 = vld [vmem:[%s273 + $0x110] sm:$0xff]
        %v367 = vld [vmem:[%s273 + $0x118] sm:$0xff]
        %v368 = vld [vmem:[%s273 + $0x120] sm:$0xff]
        %v369 = vld [vmem:[%s273 + $0x128] sm:$0xff]
        %v370 = vld [vmem:[%s273 + $0x130] sm:$0xff]
        %v371 = vld [vmem:[%s273 + $0x138] sm:$0xff]
        %v372 = vld [vmem:[%s273 + $0x140] sm:$0xff]
        %v373 = vld [vmem:[%s273 + $0x148] sm:$0xff]
        %v374 = vld [vmem:[%s273 + $0x150] sm:$0xff]
        %v375 = vld [vmem:[%s273 + $0x158] sm:$0xff]
        %v376 = vld [vmem:[%s273 + $0x160] sm:$0xff]
        %v377 = vld [vmem:[%s273 + $0x168] sm:$0xff]
        %v378 = vld [vmem:[%s273 + $0x170] sm:$0xff]
        %v379 = vld [vmem:[%s273 + $0x178] sm:$0xff]
        %v380 = vld [vmem:[%s273 + $0x180] sm:$0xff]
        %v381 = vld [vmem:[%s273 + $0x188] sm:$0xff]
        %v382 = vld [vmem:[%s273 + $0x190] sm:$0xff]
        %v383 = vld [vmem:[%s273 + $0x198] sm:$0xff]
        %v384 = vld [vmem:[%s273 + $0x1a0] sm:$0xff]
        %v385 = vld [vmem:[%s273 + $0x1a8] sm:$0xff]
        %v386 = vld [vmem:[%s273 + $0x1b0] sm:$0xff]
        %v387 = vld [vmem:[%s273 + $0x1b8] sm:$0xff]
        %v388 = vld [vmem:[%s273 + $0x1c0] sm:$0xff]
        %v389 = vld [vmem:[%s273 + $0x1c8] sm:$0xff]
        %v390 = vld [vmem:[%s273 + $0x1d0] sm:$0xff]
        %v391 = vld [vmem:[%s273 + $0x1d8] sm:$0xff]
        %v392 = vld [vmem:[%s273 + $0x1e0] sm:$0xff]
        %v393 = vld [vmem:[%s273 + $0x1e8] sm:$0xff]
        %v394 = vld [vmem:[%s273 + $0x1f0] sm:$0xff]
        %v395 = vld [vmem:[%s273 + $0x1f8] sm:$0xff]
        %v396 = vld [vmem:[%s282] sm:$0xf]
        %v398 = vlaneseq
        %v399 = vshrl.u32 %v398, 7
        %v400 = vsub.s32 0, %v399
        %v401 = vrot.slane %v396, %v400
        %v402 = vlaneseq
        %v403 = vshrl.u32 %v402, 7
        %v404 = vsub.s32 1, %v403
        %v405 = vrot.slane %v396, %v404
        %v406 = vlaneseq
        %v407 = vshrl.u32 %v406, 7
        %v408 = vsub.s32 2, %v407
        %v409 = vrot.slane %v396, %v408
        %v410 = vlaneseq
        %v411 = vshrl.u32 %v410, 7
        %v412 = vsub.s32 3, %v411
        %v413 = vrot.slane %v396, %v412
        %v482 = vunpack.c.l.b16 %v332
        %v483 = vunpack.c.h.b16 %v332
        %v484 = vunpack.c.l.b16 %v333
        %v485 = vunpack.c.h.b16 %v333
        %v486 = vunpack.c.l.b16 %v334
        %v487 = vunpack.c.h.b16 %v334
        %v488 = vunpack.c.l.b16 %v335
        %v489 = vunpack.c.h.b16 %v335
        %v490 = vunpack.c.l.b16 %v336
        %v491 = vunpack.c.h.b16 %v336
        %v492 = vunpack.c.l.b16 %v337
        %v493 = vunpack.c.h.b16 %v337
        %v494 = vunpack.c.l.b16 %v338
        %v495 = vunpack.c.h.b16 %v338
        %v496 = vunpack.c.l.b16 %v339
        %v497 = vunpack.c.h.b16 %v339
        %v498 = vunpack.c.l.b16 %v340
        %v499 = vunpack.c.h.b16 %v340
        %v500 = vunpack.c.l.b16 %v341
        %v501 = vunpack.c.h.b16 %v341
        %v502 = vunpack.c.l.b16 %v342
        %v503 = vunpack.c.h.b16 %v342
        %v504 = vunpack.c.l.b16 %v343
        %v505 = vunpack.c.h.b16 %v343
        %v506 = vunpack.c.l.b16 %v344
        %v507 = vunpack.c.h.b16 %v344
        %v508 = vunpack.c.l.b16 %v345
        %v509 = vunpack.c.h.b16 %v345
        %v510 = vunpack.c.l.b16 %v346
        %v511 = vunpack.c.h.b16 %v346
        %v512 = vunpack.c.l.b16 %v347
        %v513 = vunpack.c.h.b16 %v347
        %v514 = vunpack.c.l.b16 %v348
        %v515 = vunpack.c.h.b16 %v348
        %v516 = vunpack.c.l.b16 %v349
        %v517 = vunpack.c.h.b16 %v349
        %v518 = vunpack.c.l.b16 %v350
        %v519 = vunpack.c.h.b16 %v350
        %v520 = vunpack.c.l.b16 %v351
        %v521 = vunpack.c.h.b16 %v351
        %v522 = vunpack.c.l.b16 %v352
        %v523 = vunpack.c.h.b16 %v352
        %v524 = vunpack.c.l.b16 %v353
        %v525 = vunpack.c.h.b16 %v353
        %v526 = vunpack.c.l.b16 %v354
        %v527 = vunpack.c.h.b16 %v354
        %v528 = vunpack.c.l.b16 %v355
        %v529 = vunpack.c.h.b16 %v355
        %v530 = vunpack.c.l.b16 %v356
        %v531 = vunpack.c.h.b16 %v356
        %v532 = vunpack.c.l.b16 %v357
        %v533 = vunpack.c.h.b16 %v357
        %v534 = vunpack.c.l.b16 %v358
        %v535 = vunpack.c.h.b16 %v358
        %v536 = vunpack.c.l.b16 %v359
        %v537 = vunpack.c.h.b16 %v359
        %v538 = vunpack.c.l.b16 %v360
        %v539 = vunpack.c.h.b16 %v360
        %v540 = vunpack.c.l.b16 %v361
        %v541 = vunpack.c.h.b16 %v361
        %v542 = vunpack.c.l.b16 %v362
        %v543 = vunpack.c.h.b16 %v362
        %v544 = vunpack.c.l.b16 %v363
        %v545 = vunpack.c.h.b16 %v363
        %v546 = vunpack.c.l.b16 %v364
        %v547 = vunpack.c.h.b16 %v364
        %v548 = vunpack.c.l.b16 %v365
        %v549 = vunpack.c.h.b16 %v365
        %v550 = vunpack.c.l.b16 %v366
        %v551 = vunpack.c.h.b16 %v366
        %v552 = vunpack.c.l.b16 %v367
        %v553 = vunpack.c.h.b16 %v367
        %v554 = vunpack.c.l.b16 %v368
        %v555 = vunpack.c.h.b16 %v368
        %v556 = vunpack.c.l.b16 %v369
        %v557 = vunpack.c.h.b16 %v369
        %v558 = vunpack.c.l.b16 %v370
        %v559 = vunpack.c.h.b16 %v370
        %v560 = vunpack.c.l.b16 %v371
        %v561 = vunpack.c.h.b16 %v371
        %v562 = vunpack.c.l.b16 %v372
        %v563 = vunpack.c.h.b16 %v372
        %v564 = vunpack.c.l.b16 %v373
        %v565 = vunpack.c.h.b16 %v373
        %v566 = vunpack.c.l.b16 %v374
        %v567 = vunpack.c.h.b16 %v374
        %v568 = vunpack.c.l.b16 %v375
        %v569 = vunpack.c.h.b16 %v375
        %v570 = vunpack.c.l.b16 %v376
        %v571 = vunpack.c.h.b16 %v376
        %v572 = vunpack.c.l.b16 %v377
        %v573 = vunpack.c.h.b16 %v377
        %v574 = vunpack.c.l.b16 %v378
        %v575 = vunpack.c.h.b16 %v378
        %v576 = vunpack.c.l.b16 %v379
        %v577 = vunpack.c.h.b16 %v379
        %v578 = vunpack.c.l.b16 %v380
        %v579 = vunpack.c.h.b16 %v380
        %v580 = vunpack.c.l.b16 %v381
        %v581 = vunpack.c.h.b16 %v381
        %v582 = vunpack.c.l.b16 %v382
        %v583 = vunpack.c.h.b16 %v382
        %v584 = vunpack.c.l.b16 %v383
        %v585 = vunpack.c.h.b16 %v383
        %v586 = vunpack.c.l.b16 %v384
        %v587 = vunpack.c.h.b16 %v384
        %v588 = vunpack.c.l.b16 %v385
        %v589 = vunpack.c.h.b16 %v385
        %v590 = vunpack.c.l.b16 %v386
        %v591 = vunpack.c.h.b16 %v386
        %v592 = vunpack.c.l.b16 %v387
        %v593 = vunpack.c.h.b16 %v387
        %v594 = vunpack.c.l.b16 %v388
        %v595 = vunpack.c.h.b16 %v388
        %v596 = vunpack.c.l.b16 %v389
        %v597 = vunpack.c.h.b16 %v389
        %v598 = vunpack.c.l.b16 %v390
        %v599 = vunpack.c.h.b16 %v390
        %v600 = vunpack.c.l.b16 %v391
        %v601 = vunpack.c.h.b16 %v391
        %v602 = vunpack.c.l.b16 %v392
        %v603 = vunpack.c.h.b16 %v392
        %v604 = vunpack.c.l.b16 %v393
        %v605 = vunpack.c.h.b16 %v393
        %v606 = vunpack.c.l.b16 %v394
        %v607 = vunpack.c.h.b16 %v394
        %v608 = vunpack.c.l.b16 %v395
        %v609 = vunpack.c.h.b16 %v395
        %v610 = vpack.c.b16 %v486, %v482
        %v611 = vpack.c.b16 %v487, %v483
        %v612 = vpack.c.b16 %v488, %v484
        %v613 = vpack.c.b16 %v489, %v485
        %v614 = vpack.c.b16 %v494, %v490
        %v615 = vpack.c.b16 %v495, %v491
        %v616 = vpack.c.b16 %v496, %v492
        %v617 = vpack.c.b16 %v497, %v493
        %v618 = vpack.c.b16 %v502, %v498
        %v619 = vpack.c.b16 %v503, %v499
        %v620 = vpack.c.b16 %v504, %v500
        %v621 = vpack.c.b16 %v505, %v501
        %v622 = vpack.c.b16 %v510, %v506
        %v623 = vpack.c.b16 %v511, %v507
        %v624 = vpack.c.b16 %v512, %v508
        %v625 = vpack.c.b16 %v513, %v509
        %v626 = vpack.c.b16 %v518, %v514
        %v627 = vpack.c.b16 %v519, %v515
        %v628 = vpack.c.b16 %v520, %v516
        %v629 = vpack.c.b16 %v521, %v517
        %v630 = vpack.c.b16 %v526, %v522
        %v631 = vpack.c.b16 %v527, %v523
        %v632 = vpack.c.b16 %v528, %v524
        %v633 = vpack.c.b16 %v529, %v525
        %v634 = vpack.c.b16 %v534, %v530
        %v635 = vpack.c.b16 %v535, %v531
        %v636 = vpack.c.b16 %v536, %v532
        %v637 = vpack.c.b16 %v537, %v533
        %v638 = vpack.c.b16 %v542, %v538
        %v639 = vpack.c.b16 %v543, %v539
        %v640 = vpack.c.b16 %v544, %v540
        %v641 = vpack.c.b16 %v545, %v541
        %v642 = vpack.c.b16 %v550, %v546
        %v643 = vpack.c.b16 %v551, %v547
        %v644 = vpack.c.b16 %v552, %v548
        %v645 = vpack.c.b16 %v553, %v549
        %v646 = vpack.c.b16 %v558, %v554
        %v647 = vpack.c.b16 %v559, %v555
        %v648 = vpack.c.b16 %v560, %v556
        %v649 = vpack.c.b16 %v561, %v557
        %v650 = vpack.c.b16 %v566, %v562
        %v651 = vpack.c.b16 %v567, %v563
        %v652 = vpack.c.b16 %v568, %v564
        %v653 = vpack.c.b16 %v569, %v565
        %v654 = vpack.c.b16 %v574, %v570
        %v655 = vpack.c.b16 %v575, %v571
        %v656 = vpack.c.b16 %v576, %v572
        %v657 = vpack.c.b16 %v577, %v573
        %v658 = vpack.c.b16 %v582, %v578
        %v659 = vpack.c.b16 %v583, %v579
        %v660 = vpack.c.b16 %v584, %v580
        %v661 = vpack.c.b16 %v585, %v581
        %v662 = vpack.c.b16 %v590, %v586
        %v663 = vpack.c.b16 %v591, %v587
        %v664 = vpack.c.b16 %v592, %v588
        %v665 = vpack.c.b16 %v593, %v589
        %v666 = vpack.c.b16 %v598, %v594
        %v667 = vpack.c.b16 %v599, %v595
        %v668 = vpack.c.b16 %v600, %v596
        %v669 = vpack.c.b16 %v601, %v597
        %v670 = vpack.c.b16 %v606, %v602
        %v671 = vpack.c.b16 %v607, %v603
        %v672 = vpack.c.b16 %v608, %v604
        %v673 = vpack.c.b16 %v609, %v605
        %738 = vmatprep.subr.bf16.mxu0 %v611
        %739 = vmatpush1.bf16.msra.mxu0 %v610
        %740 = vmatprep.subr.bf16.mxu0 %v615
        %741 = vmatpush1.bf16.msra.mxu0 %v614
        %742 = vmatprep.subr.bf16.mxu0 %v619
        %743 = vmatpush1.bf16.msra.mxu0 %v618
        %744 = vmatprep.subr.bf16.mxu0 %v623
        %745 = vmatpush1.bf16.msra.mxu0 %v622
        %746 = vmatprep.subr.bf16.mxu0 %v627
        %747 = vmatpush1.bf16.msra.mxu0 %v626
        %748 = vmatprep.subr.bf16.mxu0 %v631
        %749 = vmatpush1.bf16.msra.mxu0 %v630
        %750 = vmatprep.subr.bf16.mxu0 %v635
        %751 = vmatpush1.bf16.msra.mxu0 %v634
        %752 = vmatprep.subr.bf16.mxu0 %v639
        %753 = vmatpush1.bf16.msra.mxu0 %v638
        %754 = vmatprep.subr.bf16.mxu0 %v643
        %755 = vmatpush1.bf16.msra.mxu0 %v642
        %756 = vmatprep.subr.bf16.mxu0 %v647
        %757 = vmatpush1.bf16.msra.mxu0 %v646
        %758 = vmatprep.subr.bf16.mxu0 %v651
        %759 = vmatpush1.bf16.msra.mxu0 %v650
        %760 = vmatprep.subr.bf16.mxu0 %v655
        %761 = vmatpush1.bf16.msra.mxu0 %v654
        %762 = vmatprep.subr.bf16.mxu0 %v659
        %763 = vmatpush1.bf16.msra.mxu0 %v658
        %764 = vmatprep.subr.bf16.mxu0 %v663
        %765 = vmatpush1.bf16.msra.mxu0 %v662
        %766 = vmatprep.subr.bf16.mxu0 %v667
        %767 = vmatpush1.bf16.msra.mxu0 %v666
        %768 = vmatprep.subr.bf16.mxu0 %v671
        %769 = vmatpush1.bf16.msra.mxu0 %v670
        %770 = vmatprep.mubr.bf16.mxu0 %v331
        %771 = vmatmul.mubr.bf16.gmra.mrb[0].mxu0 %v330
        %v772 = vpop.f32.mrb[0].mxu0
        %v773 = vadd.f32 %v401, %v772
        %v774 = vpop.f32.mrb[0].mxu0
        %v775 = vadd.f32 %v405, %v774
        %v776 = vpop.f32.mrb[0].mxu0
        %v777 = vadd.f32 %v401, %v776
        %v778 = vpop.f32.mrb[0].mxu0
        %v779 = vadd.f32 %v405, %v778
        %780 = vdwg.mxu0
        %781 = vmatprep.subr.bf16.mxu0 %v613
        %782 = vmatpush1.bf16.msra.mxu0 %v612
        %783 = vmatprep.subr.bf16.mxu0 %v617
        %784 = vmatpush1.bf16.msra.mxu0 %v616
        %785 = vmatprep.subr.bf16.mxu0 %v621
        %786 = vmatpush1.bf16.msra.mxu0 %v620
        %787 = vmatprep.subr.bf16.mxu0 %v625
        %788 = vmatpush1.bf16.msra.mxu0 %v624
        %789 = vmatprep.subr.bf16.mxu0 %v629
        %790 = vmatpush1.bf16.msra.mxu0 %v628
        %791 = vmatprep.subr.bf16.mxu0 %v633
        %792 = vmatpush1.bf16.msra.mxu0 %v632
        %793 = vmatprep.subr.bf16.mxu0 %v637
        %794 = vmatpush1.bf16.msra.mxu0 %v636
        %795 = vmatprep.subr.bf16.mxu0 %v641
        %796 = vmatpush1.bf16.msra.mxu0 %v640
        %797 = vmatprep.subr.bf16.mxu0 %v645
        %798 = vmatpush1.bf16.msra.mxu0 %v644
        %799 = vmatprep.subr.bf16.mxu0 %v649
        %800 = vmatpush1.bf16.msra.mxu0 %v648
        %801 = vmatprep.subr.bf16.mxu0 %v653
        %802 = vmatpush1.bf16.msra.mxu0 %v652
        %803 = vmatprep.subr.bf16.mxu0 %v657
        %804 = vmatpush1.bf16.msra.mxu0 %v656
        %805 = vmatprep.subr.bf16.mxu0 %v661
        %806 = vmatpush1.bf16.msra.mxu0 %v660
        %807 = vmatprep.subr.bf16.mxu0 %v665
        %808 = vmatpush1.bf16.msra.mxu0 %v664
        %809 = vmatprep.subr.bf16.mxu0 %v669
        %810 = vmatpush1.bf16.msra.mxu0 %v668
        %811 = vmatprep.subr.bf16.mxu0 %v673
        %812 = vmatpush1.bf16.msra.mxu0 %v672
        %813 = vmatprep.mubr.bf16.mxu0 %v331
        %814 = vmatmul.mubr.bf16.gmra.mrb[0].mxu0 %v330
        %v815 = vpop.f32.mrb[0].mxu0
        %v816 = vadd.f32 %v409, %v815
        %v817 = vpop.f32.mrb[0].mxu0
        %v818 = vadd.f32 %v413, %v817
        %v819 = vpop.f32.mrb[0].mxu0
        %v820 = vadd.f32 %v409, %v819
        %v821 = vpop.f32.mrb[0].mxu0
        %v822 = vadd.f32 %v413, %v821
        %823 = vdwg.mxu0
        %v824 = vmul.f32 %v773, 0.5
        %v825 = vmul.f32 %v775, 0.5
        %v826 = vmul.f32 %v816, 0.5
        %v827 = vmul.f32 %v818, 0.5
        %v828 = vmul.f32 %v777, 0.5
        %v829 = vmul.f32 %v779, 0.5
        %v830 = vmul.f32 %v820, 0.5
        %v831 = vmul.f32 %v822, 0.5
        %v832 = vmul.f32 %v773, 0.70710677
        %v833 = vmul.f32 %v775, 0.70710677
        %v834 = vmul.f32 %v816, 0.70710677
        %v835 = vmul.f32 %v818, 0.70710677
        %v836 = vmul.f32 %v777, 0.70710677
        %v837 = vmul.f32 %v779, 0.70710677
        %v838 = vmul.f32 %v820, 0.70710677
        %v839 = vmul.f32 %v822, 0.70710677
        %v840 = verf.f32.pop %v832
        %v841 = verf.f32.pop %v833
        %v842 = verf.f32.pop %v834
        %v843 = verf.f32.pop %v835
        %v844 = verf.f32.pop %v836
        %v845 = verf.f32.pop %v837
        %v846 = verf.f32.pop %v838
        %v847 = verf.f32.pop %v839
        %v848 = vadd.f32 %v840, 1.0
        %v849 = vadd.f32 %v841, 1.0
        %v850 = vadd.f32 %v842, 1.0
        %v851 = vadd.f32 %v843, 1.0
        %v852 = vadd.f32 %v844, 1.0
        %v853 = vadd.f32 %v845, 1.0
        %v854 = vadd.f32 %v846, 1.0
        %v855 = vadd.f32 %v847, 1.0
        %v856 = vmul.f32 %v824, %v848
        %v857 = vmul.f32 %v825, %v849
        %v858 = vmul.f32 %v826, %v850
        %v859 = vmul.f32 %v827, %v851
        %v860 = vmul.f32 %v828, %v852
        %v861 = vmul.f32 %v829, %v853
        %v862 = vmul.f32 %v830, %v854
        %v863 = vmul.f32 %v831, %v855
        %v864 = vpack.c.bf16 %v860, %v856
        %v865 = vpack.c.bf16 %v861, %v857
        %v866 = vpack.c.bf16 %v862, %v858
        %v867 = vpack.c.bf16 %v863, %v859
        %v868 = vld [vmem:[%s291] sm:$0xff]
        %v869 = vld [vmem:[%s291 + $0x8] sm:$0xff]
        %v870 = vld [vmem:[%s291 + $0x10] sm:$0xff]
        %v871 = vld [vmem:[%s291 + $0x18] sm:$0xff]
        %v872 = vld [vmem:[%s291 + $0x20] sm:$0xff]
        %v873 = vld [vmem:[%s291 + $0x28] sm:$0xff]
        %v874 = vld [vmem:[%s291 + $0x30] sm:$0xff]
        %v875 = vld [vmem:[%s291 + $0x38] sm:$0xff]
        %v876 = vld [vmem:[%s291 + $0x40] sm:$0xff]
        %v877 = vld [vmem:[%s291 + $0x48] sm:$0xff]
        %v878 = vld [vmem:[%s291 + $0x50] sm:$0xff]
        %v879 = vld [vmem:[%s291 + $0x58] sm:$0xff]
        %v880 = vld [vmem:[%s291 + $0x60] sm:$0xff]
        %v881 = vld [vmem:[%s291 + $0x68] sm:$0xff]
        %v882 = vld [vmem:[%s291 + $0x70] sm:$0xff]
        %v883 = vld [vmem:[%s291 + $0x78] sm:$0xff]
        %v884 = vld [vmem:[%s291 + $0x80] sm:$0xff]
        %v885 = vld [vmem:[%s291 + $0x88] sm:$0xff]
        %v886 = vld [vmem:[%s291 + $0x90] sm:$0xff]
        %v887 = vld [vmem:[%s291 + $0x98] sm:$0xff]
        %v888 = vld [vmem:[%s291 + $0xa0] sm:$0xff]
        %v889 = vld [vmem:[%s291 + $0xa8] sm:$0xff]
        %v890 = vld [vmem:[%s291 + $0xb0] sm:$0xff]
        %v891 = vld [vmem:[%s291 + $0xb8] sm:$0xff]
        %v892 = vld [vmem:[%s291 + $0xc0] sm:$0xff]
        %v893 = vld [vmem:[%s291 + $0xc8] sm:$0xff]
        %v894 = vld [vmem:[%s291 + $0xd0] sm:$0xff]
        %v895 = vld [vmem:[%s291 + $0xd8] sm:$0xff]
        %v896 = vld [vmem:[%s291 + $0xe0] sm:$0xff]
        %v897 = vld [vmem:[%s291 + $0xe8] sm:$0xff]
        %v898 = vld [vmem:[%s291 + $0xf0] sm:$0xff]
        %v899 = vld [vmem:[%s291 + $0xf8] sm:$0xff]
        %v900 = vld [vmem:[%s291 + $0x100] sm:$0xff]
        %v901 = vld [vmem:[%s291 + $0x108] sm:$0xff]
        %v902 = vld [vmem:[%s291 + $0x110] sm:$0xff]
        %v903 = vld [vmem:[%s291 + $0x118] sm:$0xff]
        %v904 = vld [vmem:[%s291 + $0x120] sm:$0xff]
        %v905 = vld [vmem:[%s291 + $0x128] sm:$0xff]
        %v906 = vld [vmem:[%s291 + $0x130] sm:$0xff]
        %v907 = vld [vmem:[%s291 + $0x138] sm:$0xff]
        %v908 = vld [vmem:[%s291 + $0x140] sm:$0xff]
        %v909 = vld [vmem:[%s291 + $0x148] sm:$0xff]
        %v910 = vld [vmem:[%s291 + $0x150] sm:$0xff]
        %v911 = vld [vmem:[%s291 + $0x158] sm:$0xff]
        %v912 = vld [vmem:[%s291 + $0x160] sm:$0xff]
        %v913 = vld [vmem:[%s291 + $0x168] sm:$0xff]
        %v914 = vld [vmem:[%s291 + $0x170] sm:$0xff]
        %v915 = vld [vmem:[%s291 + $0x178] sm:$0xff]
        %v916 = vld [vmem:[%s291 + $0x180] sm:$0xff]
        %v917 = vld [vmem:[%s291 + $0x188] sm:$0xff]
        %v918 = vld [vmem:[%s291 + $0x190] sm:$0xff]
        %v919 = vld [vmem:[%s291 + $0x198] sm:$0xff]
        %v920 = vld [vmem:[%s291 + $0x1a0] sm:$0xff]
        %v921 = vld [vmem:[%s291 + $0x1a8] sm:$0xff]
        %v922 = vld [vmem:[%s291 + $0x1b0] sm:$0xff]
        %v923 = vld [vmem:[%s291 + $0x1b8] sm:$0xff]
        %v924 = vld [vmem:[%s291 + $0x1c0] sm:$0xff]
        %v925 = vld [vmem:[%s291 + $0x1c8] sm:$0xff]
        %v926 = vld [vmem:[%s291 + $0x1d0] sm:$0xff]
        %v927 = vld [vmem:[%s291 + $0x1d8] sm:$0xff]
        %v928 = vld [vmem:[%s291 + $0x1e0] sm:$0xff]
        %v929 = vld [vmem:[%s291 + $0x1e8] sm:$0xff]
        %v930 = vld [vmem:[%s291 + $0x1f0] sm:$0xff]
        %v931 = vld [vmem:[%s291 + $0x1f8] sm:$0xff]
        %v996 = vunpack.c.l.b16 %v868
        %v997 = vunpack.c.h.b16 %v868
        %v998 = vunpack.c.l.b16 %v869
        %v999 = vunpack.c.h.b16 %v869
        %v1000 = vunpack.c.l.b16 %v870
        %v1001 = vunpack.c.h.b16 %v870
        %v1002 = vunpack.c.l.b16 %v871
        %v1003 = vunpack.c.h.b16 %v871
        %v1004 = vunpack.c.l.b16 %v872
        %v1005 = vunpack.c.h.b16 %v872
        %v1006 = vunpack.c.l.b16 %v873
        %v1007 = vunpack.c.h.b16 %v873
        %v1008 = vunpack.c.l.b16 %v874
        %v1009 = vunpack.c.h.b16 %v874
        %v1010 = vunpack.c.l.b16 %v875
        %v1011 = vunpack.c.h.b16 %v875
        %v1012 = vunpack.c.l.b16 %v876
        %v1013 = vunpack.c.h.b16 %v876
        %v1014 = vunpack.c.l.b16 %v877
        %v1015 = vunpack.c.h.b16 %v877
        %v1016 = vunpack.c.l.b16 %v878
        %v1017 = vunpack.c.h.b16 %v878
        %v1018 = vunpack.c.l.b16 %v879
        %v1019 = vunpack.c.h.b16 %v879
        %v1020 = vunpack.c.l.b16 %v880
        %v1021 = vunpack.c.h.b16 %v880
        %v1022 = vunpack.c.l.b16 %v881
        %v1023 = vunpack.c.h.b16 %v881
        %v1024 = vunpack.c.l.b16 %v882
        %v1025 = vunpack.c.h.b16 %v882
        %v1026 = vunpack.c.l.b16 %v883
        %v1027 = vunpack.c.h.b16 %v883
        %v1028 = vunpack.c.l.b16 %v884
        %v1029 = vunpack.c.h.b16 %v884
        %v1030 = vunpack.c.l.b16 %v885
        %v1031 = vunpack.c.h.b16 %v885
        %v1032 = vunpack.c.l.b16 %v886
        %v1033 = vunpack.c.h.b16 %v886
        %v1034 = vunpack.c.l.b16 %v887
        %v1035 = vunpack.c.h.b16 %v887
        %v1036 = vunpack.c.l.b16 %v888
        %v1037 = vunpack.c.h.b16 %v888
        %v1038 = vunpack.c.l.b16 %v889
        %v1039 = vunpack.c.h.b16 %v889
        %v1040 = vunpack.c.l.b16 %v890
        %v1041 = vunpack.c.h.b16 %v890
        %v1042 = vunpack.c.l.b16 %v891
        %v1043 = vunpack.c.h.b16 %v891
        %v1044 = vunpack.c.l.b16 %v892
        %v1045 = vunpack.c.h.b16 %v892
        %v1046 = vunpack.c.l.b16 %v893
        %v1047 = vunpack.c.h.b16 %v893
        %v1048 = vunpack.c.l.b16 %v894
        %v1049 = vunpack.c.h.b16 %v894
        %v1050 = vunpack.c.l.b16 %v895
        %v1051 = vunpack.c.h.b16 %v895
        %v1052 = vunpack.c.l.b16 %v896
        %v1053 = vunpack.c.h.b16 %v896
        %v1054 = vunpack.c.l.b16 %v897
        %v1055 = vunpack.c.h.b16 %v897
        %v1056 = vunpack.c.l.b16 %v898
        %v1057 = vunpack.c.h.b16 %v898
        %v1058 = vunpack.c.l.b16 %v899
        %v1059 = vunpack.c.h.b16 %v899
        %v1060 = vunpack.c.l.b16 %v900
        %v1061 = vunpack.c.h.b16 %v900
        %v1062 = vunpack.c.l.b16 %v901
        %v1063 = vunpack.c.h.b16 %v901
        %v1064 = vunpack.c.l.b16 %v902
        %v1065 = vunpack.c.h.b16 %v902
        %v1066 = vunpack.c.l.b16 %v903
        %v1067 = vunpack.c.h.b16 %v903
        %v1068 = vunpack.c.l.b16 %v904
        %v1069 = vunpack.c.h.b16 %v904
        %v1070 = vunpack.c.l.b16 %v905
        %v1071 = vunpack.c.h.b16 %v905
        %v1072 = vunpack.c.l.b16 %v906
        %v1073 = vunpack.c.h.b16 %v906
        %v1074 = vunpack.c.l.b16 %v907
        %v1075 = vunpack.c.h.b16 %v907
        %v1076 = vunpack.c.l.b16 %v908
        %v1077 = vunpack.c.h.b16 %v908
        %v1078 = vunpack.c.l.b16 %v909
        %v1079 = vunpack.c.h.b16 %v909
        %v1080 = vunpack.c.l.b16 %v910
        %v1081 = vunpack.c.h.b16 %v910
        %v1082 = vunpack.c.l.b16 %v911
        %v1083 = vunpack.c.h.b16 %v911
        %v1084 = vunpack.c.l.b16 %v912
        %v1085 = vunpack.c.h.b16 %v912
        %v1086 = vunpack.c.l.b16 %v913
        %v1087 = vunpack.c.h.b16 %v913
        %v1088 = vunpack.c.l.b16 %v914
        %v1089 = vunpack.c.h.b16 %v914
        %v1090 = vunpack.c.l.b16 %v915
        %v1091 = vunpack.c.h.b16 %v915
        %v1092 = vunpack.c.l.b16 %v916
        %v1093 = vunpack.c.h.b16 %v916
        %v1094 = vunpack.c.l.b16 %v917
        %v1095 = vunpack.c.h.b16 %v917
        %v1096 = vunpack.c.l.b16 %v918
        %v1097 = vunpack.c.h.b16 %v918
        %v1098 = vunpack.c.l.b16 %v919
        %v1099 = vunpack.c.h.b16 %v919
        %v1100 = vunpack.c.l.b16 %v920
        %v1101 = vunpack.c.h.b16 %v920
        %v1102 = vunpack.c.l.b16 %v921
        %v1103 = vunpack.c.h.b16 %v921
        %v1104 = vunpack.c.l.b16 %v922
        %v1105 = vunpack.c.h.b16 %v922
        %v1106 = vunpack.c.l.b16 %v923
        %v1107 = vunpack.c.h.b16 %v923
        %v1108 = vunpack.c.l.b16 %v924
        %v1109 = vunpack.c.h.b16 %v924
        %v1110 = vunpack.c.l.b16 %v925
        %v1111 = vunpack.c.h.b16 %v925
        %v1112 = vunpack.c.l.b16 %v926
        %v1113 = vunpack.c.h.b16 %v926
        %v1114 = vunpack.c.l.b16 %v927
        %v1115 = vunpack.c.h.b16 %v927
        %v1116 = vunpack.c.l.b16 %v928
        %v1117 = vunpack.c.h.b16 %v928
        %v1118 = vunpack.c.l.b16 %v929
        %v1119 = vunpack.c.h.b16 %v929
        %v1120 = vunpack.c.l.b16 %v930
        %v1121 = vunpack.c.h.b16 %v930
        %v1122 = vunpack.c.l.b16 %v931
        %v1123 = vunpack.c.h.b16 %v931
        %v1124 = vpack.c.b16 %v998, %v996
        %v1125 = vpack.c.b16 %v999, %v997
        %v1126 = vpack.c.b16 %v1002, %v1000
        %v1127 = vpack.c.b16 %v1003, %v1001
        %v1128 = vpack.c.b16 %v1006, %v1004
        %v1129 = vpack.c.b16 %v1007, %v1005
        %v1130 = vpack.c.b16 %v1010, %v1008
        %v1131 = vpack.c.b16 %v1011, %v1009
        %v1132 = vpack.c.b16 %v1014, %v1012
        %v1133 = vpack.c.b16 %v1015, %v1013
        %v1134 = vpack.c.b16 %v1018, %v1016
        %v1135 = vpack.c.b16 %v1019, %v1017
        %v1136 = vpack.c.b16 %v1022, %v1020
        %v1137 = vpack.c.b16 %v1023, %v1021
        %v1138 = vpack.c.b16 %v1026, %v1024
        %v1139 = vpack.c.b16 %v1027, %v1025
        %v1140 = vpack.c.b16 %v1030, %v1028
        %v1141 = vpack.c.b16 %v1031, %v1029
        %v1142 = vpack.c.b16 %v1034, %v1032
        %v1143 = vpack.c.b16 %v1035, %v1033
        %v1144 = vpack.c.b16 %v1038, %v1036
        %v1145 = vpack.c.b16 %v1039, %v1037
        %v1146 = vpack.c.b16 %v1042, %v1040
        %v1147 = vpack.c.b16 %v1043, %v1041
        %v1148 = vpack.c.b16 %v1046, %v1044
        %v1149 = vpack.c.b16 %v1047, %v1045
        %v1150 = vpack.c.b16 %v1050, %v1048
        %v1151 = vpack.c.b16 %v1051, %v1049
        %v1152 = vpack.c.b16 %v1054, %v1052
        %v1153 = vpack.c.b16 %v1055, %v1053
        %v1154 = vpack.c.b16 %v1058, %v1056
        %v1155 = vpack.c.b16 %v1059, %v1057
        %v1156 = vpack.c.b16 %v1062, %v1060
        %v1157 = vpack.c.b16 %v1063, %v1061
        %v1158 = vpack.c.b16 %v1066, %v1064
        %v1159 = vpack.c.b16 %v1067, %v1065
        %v1160 = vpack.c.b16 %v1070, %v1068
        %v1161 = vpack.c.b16 %v1071, %v1069
        %v1162 = vpack.c.b16 %v1074, %v1072
        %v1163 = vpack.c.b16 %v1075, %v1073
        %v1164 = vpack.c.b16 %v1078, %v1076
        %v1165 = vpack.c.b16 %v1079, %v1077
        %v1166 = vpack.c.b16 %v1082, %v1080
        %v1167 = vpack.c.b16 %v1083, %v1081
        %v1168 = vpack.c.b16 %v1086, %v1084
        %v1169 = vpack.c.b16 %v1087, %v1085
        %v1170 = vpack.c.b16 %v1090, %v1088
        %v1171 = vpack.c.b16 %v1091, %v1089
        %v1172 = vpack.c.b16 %v1094, %v1092
        %v1173 = vpack.c.b16 %v1095, %v1093
        %v1174 = vpack.c.b16 %v1098, %v1096
        %v1175 = vpack.c.b16 %v1099, %v1097
        %v1176 = vpack.c.b16 %v1102, %v1100
        %v1177 = vpack.c.b16 %v1103, %v1101
        %v1178 = vpack.c.b16 %v1106, %v1104
        %v1179 = vpack.c.b16 %v1107, %v1105
        %v1180 = vpack.c.b16 %v1110, %v1108
        %v1181 = vpack.c.b16 %v1111, %v1109
        %v1182 = vpack.c.b16 %v1114, %v1112
        %v1183 = vpack.c.b16 %v1115, %v1113
        %v1184 = vpack.c.b16 %v1118, %v1116
        %v1185 = vpack.c.b16 %v1119, %v1117
        %v1186 = vpack.c.b16 %v1122, %v1120
        %v1187 = vpack.c.b16 %v1123, %v1121
        %1252 = vmatprep.subr.bf16.mxu0 %v1125
        %1253 = vmatpush1.bf16.msra.mxu0 %v1124
        %1254 = vmatprep.subr.bf16.mxu0 %v1127
        %1255 = vmatpush1.bf16.msra.mxu0 %v1126
        %1256 = vmatprep.subr.bf16.mxu0 %v1129
        %1257 = vmatpush1.bf16.msra.mxu0 %v1128
        %1258 = vmatprep.subr.bf16.mxu0 %v1131
        %1259 = vmatpush1.bf16.msra.mxu0 %v1130
        %1260 = vmatprep.subr.bf16.mxu0 %v1133
        %1261 = vmatpush1.bf16.msra.mxu0 %v1132
        %1262 = vmatprep.subr.bf16.mxu0 %v1135
        %1263 = vmatpush1.bf16.msra.mxu0 %v1134
        %1264 = vmatprep.subr.bf16.mxu0 %v1137
        %1265 = vmatpush1.bf16.msra.mxu0 %v1136
        %1266 = vmatprep.subr.bf16.mxu0 %v1139
        %1267 = vmatpush1.bf16.msra.mxu0 %v1138
        %1268 = vmatprep.subr.bf16.mxu0 %v1141
        %1269 = vmatpush1.bf16.msra.mxu0 %v1140
        %1270 = vmatprep.subr.bf16.mxu0 %v1143
        %1271 = vmatpush1.bf16.msra.mxu0 %v1142
        %1272 = vmatprep.subr.bf16.mxu0 %v1145
        %1273 = vmatpush1.bf16.msra.mxu0 %v1144
        %1274 = vmatprep.subr.bf16.mxu0 %v1147
        %1275 = vmatpush1.bf16.msra.mxu0 %v1146
        %1276 = vmatprep.subr.bf16.mxu0 %v1149
        %1277 = vmatpush1.bf16.msra.mxu0 %v1148
        %1278 = vmatprep.subr.bf16.mxu0 %v1151
        %1279 = vmatpush1.bf16.msra.mxu0 %v1150
        %1280 = vmatprep.subr.bf16.mxu0 %v1153
        %1281 = vmatpush1.bf16.msra.mxu0 %v1152
        %1282 = vmatprep.subr.bf16.mxu0 %v1155
        %1283 = vmatpush1.bf16.msra.mxu0 %v1154
        %1284 = vmatprep.mubr.bf16.mxu0 %v865
        %1285 = vmatmul.mubr.bf16.gmra.mrb[0].mxu0 %v864
        %v1286 = vpop.f32.mrb[0].mxu0
        %v1287 = vadd.f32 0.0, %v1286
        %v1288 = vpop.f32.mrb[0].mxu0
        %v1289 = vadd.f32 0.0, %v1288
        %v1290 = vpop.f32.mrb[0].mxu0
        %v1291 = vadd.f32 0.0, %v1290
        %v1292 = vpop.f32.mrb[0].mxu0
        %v1293 = vadd.f32 0.0, %v1292
        %1294 = vdwg.mxu0
        %1295 = vmatprep.subr.bf16.mxu0 %v1157
        %1296 = vmatpush1.bf16.msra.mxu0 %v1156
        %1297 = vmatprep.subr.bf16.mxu0 %v1159
        %1298 = vmatpush1.bf16.msra.mxu0 %v1158
        %1299 = vmatprep.subr.bf16.mxu0 %v1161
        %1300 = vmatpush1.bf16.msra.mxu0 %v1160
        %1301 = vmatprep.subr.bf16.mxu0 %v1163
        %1302 = vmatpush1.bf16.msra.mxu0 %v1162
        %1303 = vmatprep.subr.bf16.mxu0 %v1165
        %1304 = vmatpush1.bf16.msra.mxu0 %v1164
        %1305 = vmatprep.subr.bf16.mxu0 %v1167
        %1306 = vmatpush1.bf16.msra.mxu0 %v1166
        %1307 = vmatprep.subr.bf16.mxu0 %v1169
        %1308 = vmatpush1.bf16.msra.mxu0 %v1168
        %1309 = vmatprep.subr.bf16.mxu0 %v1171
        %1310 = vmatpush1.bf16.msra.mxu0 %v1170
        %1311 = vmatprep.subr.bf16.mxu0 %v1173
        %1312 = vmatpush1.bf16.msra.mxu0 %v1172
        %1313 = vmatprep.subr.bf16.mxu0 %v1175
        %1314 = vmatpush1.bf16.msra.mxu0 %v1174
        %1315 = vmatprep.subr.bf16.mxu0 %v1177
        %1316 = vmatpush1.bf16.msra.mxu0 %v1176
        %1317 = vmatprep.subr.bf16.mxu0 %v1179
        %1318 = vmatpush1.bf16.msra.mxu0 %v1178
        %1319 = vmatprep.subr.bf16.mxu0 %v1181
        %1320 = vmatpush1.bf16.msra.mxu0 %v1180
        %1321 = vmatprep.subr.bf16.mxu0 %v1183
        %1322 = vmatpush1.bf16.msra.mxu0 %v1182
        %1323 = vmatprep.subr.bf16.mxu0 %v1185
        %1324 = vmatpush1.bf16.msra.mxu0 %v1184
        %1325 = vmatprep.subr.bf16.mxu0 %v1187
        %1326 = vmatpush1.bf16.msra.mxu0 %v1186
        %1327 = vmatprep.mubr.bf16.mxu0 %v867
        %1328 = vmatmul.mubr.bf16.gmra.mrb[0].mxu0 %v866
        %v1329 = vpop.f32.mrb[0].mxu0
        %v1330 = vadd.f32 %v1287, %v1329
        %v1331 = vpop.f32.mrb[0].mxu0
        %v1332 = vadd.f32 %v1289, %v1331
        %v1333 = vpop.f32.mrb[0].mxu0
        %v1334 = vadd.f32 %v1291, %v1333
        %v1335 = vpop.f32.mrb[0].mxu0
        %v1336 = vadd.f32 %v1293, %v1335
        %1337 = vdwg.mxu0
        %p1338 = scmp.eq.s32.totalorder %s28, 0
        // Predicated region
        $region53: #{tpu_custom_call.1} parent=35 // pred_check
          %p1339 = pneg %p1338
        $region54: #{tpu_custom_call.1} parent=35 // pred_check_branch
          %1341 = sbr.rel (%p1339) target = $region56
        $region55: #{tpu_custom_call.1} parent=35 // pred_region
          %1342 = vst [vmem:[#allocation10] sm:$0xff] %v1330
          %1343 = vst [vmem:[#allocation10 + $0x8] sm:$0xff] %v1332
          %1344 = vst [vmem:[#allocation10 + $0x10] sm:$0xff] %v1334
          %1345 = vst [vmem:[#allocation10 + $0x18] sm:$0xff] %v1336
        $region56: #{tpu_custom_call.1} parent=35 // pred_fallthru
          _
        %p1346 = scmp.gt.s32.totalorder %s28, 0
        // Predicated region
        $region57: #{tpu_custom_call.1} parent=35 // pred_check
          %p1347 = pneg %p1346
        $region58: #{tpu_custom_call.1} parent=35 // pred_check_branch
          %1349 = sbr.rel (%p1347) target = $region60
        $region59: #{tpu_custom_call.1} parent=35 // pred_region
          %v1350 = vld [vmem:[#allocation10] sm:$0xff]
          %v1351 = vld [vmem:[#allocation10 + $0x8] sm:$0xff]
          %v1352 = vld [vmem:[#allocation10 + $0x10] sm:$0xff]
          %v1353 = vld [vmem:[#allocation10 + $0x18] sm:$0xff]
          %v1354 = vadd.f32 %v1350, %v1330
          %v1355 = vadd.f32 %v1351, %v1332
          %v1356 = vadd.f32 %v1352, %v1334
          %v1357 = vadd.f32 %v1353, %v1336
          %1358 = vst [vmem:[#allocation10] sm:$0xff] %v1354
          %1359 = vst [vmem:[#allocation10 + $0x8] sm:$0xff] %v1355
          %1360 = vst [vmem:[#allocation10 + $0x10] sm:$0xff] %v1356
          %1361 = vst [vmem:[#allocation10 + $0x18] sm:$0xff] %v1357
        $region60: #{tpu_custom_call.1} parent=35 // pred_fallthru
          _
        // Predicated region
        $region61: #{tpu_custom_call.1} parent=35 // pred_check
          %p1362 = pneg %p157
        $region62: #{tpu_custom_call.1} parent=35 // pred_check_branch
          %1364 = sbr.rel (%p1362) target = $region64
        $region63: #{tpu_custom_call.1} parent=35 // pred_region
          %s1365 = smul.u32 2, %s27
          %s1367 = ssub.s32 512, 512
          %1368 = vsyncadd [#allocation4], %s1367
          %s1369 = smul.addr %s1365, 2
          %s1370 = smul.addr %s1369, 128
          %s1371 = scalar_lea.hbm %s4, %s1370
          %s1372 = sshll.u32 [#allocation10], 4
          %s1373 = int_to_ptr.vmem [resolvable:$true] %s1372
          %1378 = dma.vmem_to_hbm [thread:$0]  %s1373, 512, %s1371, [#allocation4], 256, 256, 16
        $region64: #{tpu_custom_call.1} parent=35 // pred_fallthru
          _
        // Predicated region
        $region65: #{tpu_custom_call.1} parent=35 // pred_check
          %p1379 = pneg %p157
        $region66: #{tpu_custom_call.1} parent=35 // pred_check_branch
          %1381 = sbr.rel (%p1379) target = $region68
        $region67: #{tpu_custom_call.1} parent=35 // pred_region
          %1382 = dma.done [#allocation4], 512
        $region68: #{tpu_custom_call.1} parent=35 // pred_fallthru
          _
      $region36: #{tpu_custom_call.1} parent=5 // pred_fallthru
        _
      %p1383 = scmp.le.s32.totalorder 2, %s18
      // Predicated region
      $region69: #{tpu_custom_call.1} parent=5 // pred_check
        %p1384 = pneg %p1383
      $region70: #{tpu_custom_call.1} parent=5 // pred_check_branch
        %1386 = sbr.rel (%p1384) target = $region72
      $region71: #{tpu_custom_call.1} parent=5 // pred_region
        %s1387 = ssub.s32 %s18, 2
      $region72: #{tpu_custom_call.1} parent=5 // pred_fallthru
        _
    $region6: #{tpu_custom_call.1} parent=1 // loop_footer
      %s22 = sadd.s32 1, %s18
    $region7: #{tpu_custom_call.1} parent=1 // loop_footer_branch
      %17 = sbr.rel target = $region3
    $region8: #{tpu_custom_call.1} parent=1 // loop_exit
      _
    %1388 = vsyncpa [#allocation3], 1
    %s1389 = scalar_lea.sflag [#allocation3], 1
    %1390 = vsyncpa %s1389, 1
    %1391 = vsyncpa [#allocation6], 1
    %s1392 = scalar_lea.sflag [#allocation6], 1
    %1393 = vsyncpa %s1392, 1
    %1394 = vsyncpa [#allocation9], 1
    %s1395 = scalar_lea.sflag [#allocation9], 1
    %1396 = vsyncpa %s1395, 1
    %1397 = vsyncpa [#allocation4], 1
    %s1398 = scalar_lea.sflag [#allocation4], 1
    %1399 = vsyncpa %s1398, 1

</llo_original>
